<compile_context>
chip_gen: v7x
topology: tpu7x:2x2x1
jax: 0.10.0
libtpu: 0.0.40
codegen_flags: <defaults>
</compile_context>

<pallas_src>
import functools

import jax
import jax.numpy as jnp
from jax.experimental import pallas as pl
from jax.experimental.pallas import tpu as pltpu

_MiB = 1024 * 1024


def _upsam4_kernel(x_ref, w1_ref, b1_ref, w2_ref, b2_ref, o_ref):
    # x_ref : [TM, C_in]        (VMEM tile of voxels)
    # w1_ref: [C_in, C_out]
    # b1_ref: [1, C_out]        (f32)
    # w2_ref: [C_out, C_out*64]
    # b2_ref: [1, C_out*64]     (f32)
    # o_ref : [TM, C_out*64]
    h = jnp.dot(x_ref[...], w1_ref[...], preferred_element_type=jnp.float32)
    h = jnp.maximum(h + b1_ref[...], 0.0)                     # 1x1x1 conv + ReLU (f32)
    z = jnp.dot(h.astype(w2_ref.dtype), w2_ref[...],
                preferred_element_type=jnp.float32)
    z = jnp.maximum(z + b2_ref[...], 0.0)                     # transposed conv + ReLU (f32)
    o_ref[...] = z.astype(o_ref.dtype)


def _choose_tm(M, bytes_in_row, bytes_out_row, weight_bytes):
    """Largest M-tile fitting a conservative, cross-generation VMEM budget."""
    # ~40 MiB total keeps headroom on v7x (64 MiB physical / TensorCore);
    # v5e/v6e have 128 MiB physical.
    total_budget = 40 * _MiB
    tile_budget = max(total_budget - 2 * weight_bytes - 2 * _MiB, 4 * _MiB)
    # Input and output tiles are double-buffered by the Pallas pipeline.
    per_row = 2 * (bytes_in_row + bytes_out_row)
    tm = int(tile_budget // per_row)
    tm = max(128, min(2048, tm))
    tm -= tm % 8
    if M <= tm:
        return max(8, ((M + 7) // 8) * 8)  # single block
    # Prefer an exact divisor of M so no padding copy / padded writes happen.
    for cand in range(tm, 127, -8):
        if M % cand == 0:
            return cand
    return tm


def _fused_matmuls(x2d, w1, b1, w2f, b2f, *, out_dtype):
    """x2d: [M, C_in] -> [M, C_out*64] via the fused Pallas kernel."""
    M, C_in = x2d.shape
    C_out = w1.shape[1]
    K = w2f.shape[1]  # C_out * 64

    in_isz = jnp.dtype(x2d.dtype).itemsize
    out_isz = jnp.dtype(out_dtype).itemsize
    weight_bytes = (w1.size * jnp.dtype(w1.dtype).itemsize
                    + b1.size * jnp.dtype(b1.dtype).itemsize
                    + w2f.size * jnp.dtype(w2f.dtype).itemsize
                    + b2f.size * jnp.dtype(b2f.dtype).itemsize)

    tm = _choose_tm(M, C_in * in_isz, K * out_isz, weight_bytes)
    M_pad = ((M + tm - 1) // tm) * tm
    if M_pad != M:
        # Only the (64x smaller) input side is ever padded, and only when no
        # divisor-friendly tile exists.
        x2d = jnp.pad(x2d, ((0, M_pad - M), (0, 0)))

    # Explicit scoped-VMEM limit: v5e defaults to 16 MiB which would shrink the
    # pipeline; sized from the real footprint and capped well under v7x physical.
    est_vmem = 2 * tm * (C_in * in_isz + K * out_isz) + 2 * weight_bytes + 2 * _MiB
    vmem_limit = int(min(56 * _MiB, max(est_vmem, 32 * _MiB)))

    grid = (M_pad // tm,)
    out = pl.pallas_call(
        _upsam4_kernel,
        out_shape=jax.ShapeDtypeStruct((M_pad, K), out_dtype),
        grid_spec=pltpu.PrefetchScalarGridSpec(
            num_scalar_prefetch=0,
            grid=grid,
            in_specs=[
                pl.BlockSpec((tm, C_in), lambda i: (i, 0)),
                # Grid-invariant operands: constant index_map -> fetched once,
                # re-used across all M-tiles (no re-DMA per step).
                pl.BlockSpec((C_in, C_out), lambda i: (0, 0)),
                pl.BlockSpec((1, C_out), lambda i: (0, 0)),
                pl.BlockSpec((C_out, K), lambda i: (0, 0)),
                pl.BlockSpec((1, K), lambda i: (0, 0)),
            ],
            # Lane-dense output tile: last dim = C_out*64 (multiple of 128 for
            # even C_out) -> unmasked stores on the write-bound path.
            out_specs=pl.BlockSpec((tm, K), lambda i: (i, 0)),
        ),
        compiler_params=pltpu.CompilerParams(
            dimension_semantics=("parallel",),  # shard M-tiles across TCs (v7x megacore)
            vmem_limit_bytes=vmem_limit,
        ),
    )(x2d, w1, b1, w2f, b2f)

    if M_pad != M:
        out = out[:M]
    return out


@functools.partial(jax.jit, static_argnames=("compute_dtype", "out_dtype"))
def upsam4_forward(x, params, *, compute_dtype=None, out_dtype=None):
    """x: [N, C_in, D, H, W] (NCDHW, like PyTorch) -> [N, C_out, 4D, 4H, 4W].

    compute_dtype: optionally cast activations/weights (e.g. jnp.bfloat16) for the
                   MXU; accumulation, bias and ReLU stay in f32.
    out_dtype    : optionally store the kernel output in bf16 to halve HBM writes.
    Defaults (None) keep exact f32 semantics of the PyTorch module.
    """
    w1, b1, w2, b2 = params["w1"], params["b1"], params["w2"], params["b2"]
    N, C_in, D, H, W = x.shape
    C_out = w1.shape[0]  # torch Conv3d weight: (out, in, 1, 1, 1)
    out_dtype = x.dtype if out_dtype is None else out_dtype

    # ---- glue (input side, 64x smaller than the output): NCDHW -> [M, C_in] ----
    x2d = jnp.transpose(x, (0, 2, 3, 4, 1)).reshape(N * D * H * W, C_in)

    # Conv3d(k=1) weight (C_out, C_in, 1,1,1) -> [C_in, C_out]
    w1m = jnp.transpose(w1.reshape(C_out, C_in), (1, 0))
    b1m = b1.reshape(1, C_out).astype(jnp.float32)

    # ConvTranspose3d weight (C_out, C_out, 4,4,4) -> [C_out, C_out*64]
    # flat output-column ordering: (c_out, kd, kh, kw)
    w2m = w2.reshape(C_out, C_out * 4 * 4 * 4)
    # bias: each output voxel receives exactly one contribution (stride == kernel)
    b2m = jnp.repeat(b2, 4 * 4 * 4).reshape(1, C_out * 64).astype(jnp.float32)

    if compute_dtype is not None:
        x2d = x2d.astype(compute_dtype)
        w1m = w1m.astype(compute_dtype)
        w2m = w2m.astype(compute_dtype)

    # ---- hot path: fused matmuls in Pallas ----
    out2d = _fused_matmuls(x2d, w1m, b1m, w2m, b2m, out_dtype=out_dtype)  # [M, C_out*64]

    # ---- glue (output side): scatter the 4x4x4 blocks back to NCDHW ----
    # TODO(synk): this XLA transpose is an extra HBM round trip of the 64x output;
    # emitting NCDHW directly from the kernel needs sub-(8,128) lane/sublane
    # interleaves in VMEM that do not lower robustly, so it stays in XLA.
    out = out2d.reshape(N, D, H, W, C_out, 4, 4, 4)
    out = jnp.transpose(out, (0, 4, 1, 5, 2, 6, 3, 7))  # N, C_out, D,4, H,4, W,4
    out = out.reshape(N, C_out, 4 * D, 4 * H, 4 * W)
    return out


def init_params(key, in_channels, out_channels):
    k1, k2, k3, k4 = jax.random.split(key, 4)
    # Deterministic small-scale init (shapes match the PyTorch module).
    w1 = 0.1 * jax.random.normal(k1, (out_channels, in_channels, 1, 1, 1), jnp.float32)
    b1 = 0.1 * jax.random.normal(k2, (out_channels,), jnp.float32)
    w2 = 0.1 * jax.random.normal(k3, (out_channels, out_channels, 4, 4, 4), jnp.float32)
    b2 = 0.1 * jax.random.normal(k4, (out_channels,), jnp.float32)
    return {"w1": w1, "b1": b1, "w2": w2, "b2": b2}


def _reference(x, params):
    """Plain-JAX reference with the same NCDHW semantics (no Pallas)."""
    w1, b1, w2, b2 = params["w1"], params["b1"], params["w2"], params["b2"]
    N, C_in, D, H, W = x.shape
    C_out = w1.shape[0]
    # 1x1x1 conv + ReLU
    y = jnp.einsum("ncdhw,oc->nodhw", x, w1.reshape(C_out, C_in)) + b1[None, :, None, None, None]
    y = jnp.maximum(y, 0.0)
    # ConvTranspose3d k=4, s=4 (non-overlapping) + ReLU
    z = jnp.einsum("ncdhw,coabg->nodahbwg", y, w2)  # N,Co,D,4,H,4,W,4 (a,b,g = kd,kh,kw)
    z = z.reshape(N, C_out, 4 * D, 4 * H, 4 * W) + b2[None, :, None, None, None]
    return jnp.maximum(z, 0.0)


if __name__ == "__main__":
    key = jax.random.PRNGKey(0)
    k_x, k_p = jax.random.split(key)

    N, C_in, C_out = 2, 8, 4
    D = H = W = 4
    x = jax.random.normal(k_x, (N, C_in, D, H, W), jnp.float32)
    params = init_params(k_p, C_in, C_out)

    ref = _reference(x, params)

    # Exact (f32) path: must match the PyTorch-module semantics tightly.
    out = upsam4_forward(x, params)
    out = jax.block_until_ready(out)
    assert out.shape == (N, C_out, 4 * D, 4 * H, 4 * W), out.shape
    assert jnp.allclose(out, ref, atol=1e-4, rtol=1e-4), float(jnp.max(jnp.abs(out - ref)))

    # Optional reduced-precision path (bf16 MXU inputs + bf16 stores): halves
    # DMA bytes on a write-bound op; checked against the reference loosely.
    out_bf16 = upsam4_forward(x, params,
                              compute_dtype=jnp.bfloat16, out_dtype=jnp.bfloat16)
    out_bf16 = jax.block_until_ready(out_bf16)
    assert out_bf16.shape == out.shape and out_bf16.dtype == jnp.bfloat16
    assert jnp.allclose(out_bf16.astype(jnp.float32), ref, atol=1e-1, rtol=1e-1)

    print("KERNEL_OK")
</pallas_src>

<mosaic_0001>
module attributes {stable_mosaic.version = 11 : i64} {
  func.func @_upsam4_kernel(%arg0: i32, %arg1: memref<128x8xf32, #tpu.memory_space<vmem>>, %arg2: memref<8x4xf32, #tpu.memory_space<vmem>>, %arg3: memref<1x4xf32, #tpu.memory_space<vmem>>, %arg4: memref<4x256xf32, #tpu.memory_space<vmem>>, %arg5: memref<1x256xf32, #tpu.memory_space<vmem>>, %arg6: memref<128x256xf32, #tpu.memory_space<vmem>>) attributes {dimension_semantics = [#tpu.dimension_semantics<parallel>], iteration_bounds = array<i64: 1>, scalar_prefetch = 0 : i64, scratch_operands = 0 : i64, tpu.core_type = #tpu.core_type<tc>, window_params = [{transform_indices = @transform_0, window_bounds = array<i64: 128, 8>}, {pipeline_mode = #tpu.pipeline_mode<synchronous>, transform_indices = @transform_1, window_bounds = array<i64: 8, 4>}, {pipeline_mode = #tpu.pipeline_mode<synchronous>, transform_indices = @transform_2, window_bounds = array<i64: 1, 4>}, {pipeline_mode = #tpu.pipeline_mode<synchronous>, transform_indices = @transform_3, window_bounds = array<i64: 4, 256>}, {pipeline_mode = #tpu.pipeline_mode<synchronous>, transform_indices = @transform_4, window_bounds = array<i64: 1, 256>}, {transform_indices = @transform_5, window_bounds = array<i64: 128, 256>}]} {
    %c0 = arith.constant 0 : index
    %c0_0 = arith.constant 0 : index
    %0 = vector.load %arg1[%c0, %c0_0] : memref<128x8xf32, #tpu.memory_space<vmem>>, vector<128x8xf32>
    %c0_1 = arith.constant 0 : index
    %c0_2 = arith.constant 0 : index
    %1 = vector.load %arg2[%c0_1, %c0_2] : memref<8x4xf32, #tpu.memory_space<vmem>>, vector<8x4xf32>
    %cst = arith.constant dense<0.000000e+00> : vector<128x4xf32>
    %2 = tpu.matmul %0, %1, %cst {dimension_numbers = #tpu.dot_dimension_numbers<[1], [0], [0], [1], [0, 0, 1, 1], [], []>} : vector<128x8xf32>, vector<8x4xf32>, vector<128x4xf32> -> vector<128x4xf32>
    %c0_3 = arith.constant 0 : index
    %c0_4 = arith.constant 0 : index
    %3 = vector.load %arg3[%c0_3, %c0_4] : memref<1x4xf32, #tpu.memory_space<vmem>>, vector<1x4xf32>
    %4 = vector.broadcast %3 : vector<1x4xf32> to vector<128x4xf32>
    %5 = arith.addf %2, %4 : vector<128x4xf32>
    %cst_5 = arith.constant 0.000000e+00 : f32
    %6 = vector.broadcast %cst_5 : f32 to vector<128x4xf32>
    %7 = arith.maximumf %5, %6 : vector<128x4xf32>
    %c0_6 = arith.constant 0 : index
    %c0_7 = arith.constant 0 : index
    %8 = vector.load %arg4[%c0_6, %c0_7] : memref<4x256xf32, #tpu.memory_space<vmem>>, vector<4x256xf32>
    %cst_8 = arith.constant dense<0.000000e+00> : vector<128x256xf32>
    %9 = tpu.matmul %7, %8, %cst_8 {dimension_numbers = #tpu.dot_dimension_numbers<[1], [0], [0], [1], [0, 0, 1, 1], [], []>} : vector<128x4xf32>, vector<4x256xf32>, vector<128x256xf32> -> vector<128x256xf32>
    %c0_9 = arith.constant 0 : index
    %c0_10 = arith.constant 0 : index
    %10 = vector.load %arg5[%c0_9, %c0_10] : memref<1x256xf32, #tpu.memory_space<vmem>>, vector<1x256xf32>
    %11 = vector.broadcast %10 : vector<1x256xf32> to vector<128x256xf32>
    %12 = arith.addf %9, %11 : vector<128x256xf32>
    %cst_11 = arith.constant 0.000000e+00 : f32
    %13 = vector.broadcast %cst_11 : f32 to vector<128x256xf32>
    %14 = arith.maximumf %12, %13 : vector<128x256xf32>
    %c0_12 = arith.constant 0 : index
    %c0_13 = arith.constant 0 : index
    %15 = vector.load %arg6[%c0_12, %c0_13] : memref<128x256xf32, #tpu.memory_space<vmem>>, vector<128x256xf32>
    tpu.vector_store %arg6[%c0_12, %c0_13], %14 {strides = array<i32>} : memref<128x256xf32, #tpu.memory_space<vmem>>, vector<128x256xf32>,
    return
  }
  func.func @transform_0(%arg0: i32) -> (i32, i32) {
    %c0_i32 = arith.constant 0 : i32
    %c0_i32_0 = arith.constant 0 : i32
    return %arg0, %c0_i32 : i32, i32
  }
  func.func @transform_1(%arg0: i32) -> (i32, i32) {
    %c0_i32 = arith.constant 0 : i32
    %c0_i32_0 = arith.constant 0 : i32
    %c0_i32_1 = arith.constant 0 : i32
    return %c0_i32, %c0_i32_0 : i32, i32
  }
  func.func @transform_2(%arg0: i32) -> (i32, i32) {
    %c0_i32 = arith.constant 0 : i32
    %c0_i32_0 = arith.constant 0 : i32
    %c0_i32_1 = arith.constant 0 : i32
    return %c0_i32, %c0_i32_0 : i32, i32
  }
  func.func @transform_3(%arg0: i32) -> (i32, i32) {
    %c0_i32 = arith.constant 0 : i32
    %c0_i32_0 = arith.constant 0 : i32
    %c0_i32_1 = arith.constant 0 : i32
    return %c0_i32, %c0_i32_0 : i32, i32
  }
  func.func @transform_4(%arg0: i32) -> (i32, i32) {
    %c0_i32 = arith.constant 0 : i32
    %c0_i32_0 = arith.constant 0 : i32
    %c0_i32_1 = arith.constant 0 : i32
    return %c0_i32, %c0_i32_0 : i32, i32
  }
  func.func @transform_5(%arg0: i32) -> (i32, i32) {
    %c0_i32 = arith.constant 0 : i32
    %c0_i32_0 = arith.constant 0 : i32
    return %arg0, %c0_i32 : i32, i32
  }
}

</mosaic_0001>

<llo_original>
// kernel: upsam4_forward.1
$region0: #{upsam4_forward.1}
  #allocation0 [shape = 'u32[]', space=smem, size = 0x4, offset = 0x4, fixed_abs, tag = 'smem constant byte address 0x4 - core index']
  #allocation1 [shape = 'u32[144,128]{1,0:T(1,128)}', space=vmem, size = 0x12000, scoped, tag = 'internal scratch']
  %s0 = inlined_call_operand.hbm [shape: f32[128,8], index: 0, kind: input, shape index: {}]
  %s1 = inlined_call_operand.vmem [shape: f32[8,4], index: 1, kind: input, shape index: {}]
  %s2 = inlined_call_operand.hbm [shape: f32[1,4], index: 2, kind: input, shape index: {}]
  %s3 = inlined_call_operand.vmem [shape: f32[4,256], index: 3, kind: input, shape index: {}]
  %s4 = inlined_call_operand.vmem [shape: f32[1,256], index: 4, kind: input, shape index: {}]
  %s5 = inlined_call_operand.vmem [shape: f32[128,256], index: 5, kind: output, shape index: {}]
  %s6 = sld [smem:[#allocation0]]
  $region38: #{upsam4_forward.1} parent=0
    _
  %s8 = ssub.s32 1, %s6
  %s9 = scalar_select 0, %s8, %s6
  $region1: #{upsam4_forward.1} parent=0
    #allocation2 [shape = 'u8[65536]{0}', space=vmem, size = 0x10000, scoped, tag = 'input window, operand 0, single buffered']
    #allocation3 [shape = 's32[1]{0}', space=sflag, size = 0x4, scoped, tag = 'scoped memory for upsam4_forward.1']
    #allocation4 [shape = 'u8[512]{0}', space=vmem, size = 0x400, scoped, tag = 'input window, operand 2, single buffered']
    #allocation5 [shape = 's32[1]{0}', space=sflag, size = 0x4, scoped, tag = 'scoped memory for upsam4_forward.1']
    %10 = vsyncpa [#allocation3], 0
    %11 = vsyncpa [#allocation5], 0
    // Predicated region
    $region2: #{upsam4_forward.1} parent=1 // pred_check
      _
    $region3: #{upsam4_forward.1} parent=1 // pred_check_branch
      %13 = sbr.rel (0) target = $region5
    $region4: #{upsam4_forward.1} parent=1 // pred_region
      %s15 = ssub.s32 2048, 2048
      %16 = vsyncadd [#allocation3], %s15
      %s17 = sshll.u32 [#allocation2], 4
      %s18 = int_to_ptr.vmem [resolvable:$true] %s17
      %23 = dma.hbm_to_vmem [thread:$0]  %s0, 2048, %s18, [#allocation3], 128, 128, 8
    $region5: #{upsam4_forward.1} parent=1 // pred_fallthru
      _
    // Predicated region
    $region6: #{upsam4_forward.1} parent=1 // pred_check
      _
    $region7: #{upsam4_forward.1} parent=1 // pred_check_branch
      %25 = sbr.rel (0) target = $region9
    $region8: #{upsam4_forward.1} parent=1 // pred_region
      _
    $region9: #{upsam4_forward.1} parent=1 // pred_fallthru
      _
    // Predicated region
    $region10: #{upsam4_forward.1} parent=1 // pred_check
      _
    $region11: #{upsam4_forward.1} parent=1 // pred_check_branch
      %27 = sbr.rel (0) target = $region13
    $region12: #{upsam4_forward.1} parent=1 // pred_region
      %s29 = ssub.s32 16, 16
      %30 = vsyncadd [#allocation5], %s29
      %s32 = sshll.u32 [#allocation4], 4
      %s33 = int_to_ptr.vmem [resolvable:$true] %s32
      %35 = dma.hbm_to_vmem [thread:$0]  %s2, 16, %s33, [#allocation5]
    $region13: #{upsam4_forward.1} parent=1 // pred_fallthru
      _
    // Predicated region
    $region14: #{upsam4_forward.1} parent=1 // pred_check
      _
    $region15: #{upsam4_forward.1} parent=1 // pred_check_branch
      %37 = sbr.rel (0) target = $region17
    $region16: #{upsam4_forward.1} parent=1 // pred_region
      _
    $region17: #{upsam4_forward.1} parent=1 // pred_fallthru
      _
    // Predicated region
    $region18: #{upsam4_forward.1} parent=1 // pred_check
      _
    $region19: #{upsam4_forward.1} parent=1 // pred_check_branch
      %39 = sbr.rel (0) target = $region21
    $region20: #{upsam4_forward.1} parent=1 // pred_region
      _
    $region21: #{upsam4_forward.1} parent=1 // pred_fallthru
      _
    // Predicated region
    $region22: #{upsam4_forward.1} parent=1 // pred_check
      _
    $region23: #{upsam4_forward.1} parent=1 // pred_check_branch
      %41 = sbr.rel (0) target = $region25
    $region24: #{upsam4_forward.1} parent=1 // pred_region
      %42 = dma.done [#allocation3], 2048
    $region25: #{upsam4_forward.1} parent=1 // pred_fallthru
      _
    // Predicated region
    $region26: #{upsam4_forward.1} parent=1 // pred_check
      _
    $region27: #{upsam4_forward.1} parent=1 // pred_check_branch
      %44 = sbr.rel (0) target = $region29
    $region28: #{upsam4_forward.1} parent=1 // pred_region
      %45 = dma.done [#allocation5], 16
    $region29: #{upsam4_forward.1} parent=1 // pred_fallthru
      _
    %v46 = vld [vmem:[#allocation2] sm:$0xff]
    %v47 = vld [vmem:[#allocation2 + $0x8] sm:$0xff]
    %v48 = vld [vmem:[#allocation2 + $0x10] sm:$0xff]
    %v49 = vld [vmem:[#allocation2 + $0x18] sm:$0xff]
    %v50 = vld [vmem:[#allocation2 + $0x20] sm:$0xff]
    %v51 = vld [vmem:[#allocation2 + $0x28] sm:$0xff]
    %v52 = vld [vmem:[#allocation2 + $0x30] sm:$0xff]
    %v53 = vld [vmem:[#allocation2 + $0x38] sm:$0xff]
    %v54 = vld [vmem:[#allocation2 + $0x40] sm:$0xff]
    %v55 = vld [vmem:[#allocation2 + $0x48] sm:$0xff]
    %v56 = vld [vmem:[#allocation2 + $0x50] sm:$0xff]
    %v57 = vld [vmem:[#allocation2 + $0x58] sm:$0xff]
    %v58 = vld [vmem:[#allocation2 + $0x60] sm:$0xff]
    %v59 = vld [vmem:[#allocation2 + $0x68] sm:$0xff]
    %v60 = vld [vmem:[#allocation2 + $0x70] sm:$0xff]
    %v61 = vld [vmem:[#allocation2 + $0x78] sm:$0xff]
    %v62 = vld [vmem:[%s1] sm:$0xff]
    %v63 = vld [vmem:[#allocation4] sm:$0x1]
    %v65 = vlaneseq
    %v66 = vshrl.u32 %v65, 7
    %v67 = vsub.s32 0, %v66
    %v68 = vrot.slane %v63, %v67
    %vm70 = vcmask 64512
    %v72 = vsel %vm70, %v46, 0
    %v75 = vsel %vm70, %v47, 0
    %v78 = vsel %vm70, %v48, 0
    %v81 = vsel %vm70, %v49, 0
    %v84 = vsel %vm70, %v50, 0
    %v87 = vsel %vm70, %v51, 0
    %v90 = vsel %vm70, %v52, 0
    %v93 = vsel %vm70, %v53, 0
    %v96 = vsel %vm70, %v54, 0
    %v99 = vsel %vm70, %v55, 0
    %v102 = vsel %vm70, %v56, 0
    %v105 = vsel %vm70, %v57, 0
    %v108 = vsel %vm70, %v58, 0
    %v111 = vsel %vm70, %v59, 0
    %v114 = vsel %vm70, %v60, 0
    %v117 = vsel %vm70, %v61, 0
    %119 = vmatprep.subr.mxu0 0.0
    %120 = vmatpush1.msra.mxu0 %v62
    %121 = vmatprep.subr.mxu0 0.0
    %122 = vmatpush1.msra.mxu0 0.0
    %123 = vmatprep.subr.mxu0 0.0
    %124 = vmatpush1.msra.mxu0 0.0
    %125 = vmatprep.subr.mxu0 0.0
    %126 = vmatpush1.msra.mxu0 0.0
    %127 = vmatprep.subr.mxu0 0.0
    %128 = vmatpush1.msra.mxu0 0.0
    %129 = vmatprep.subr.mxu0 0.0
    %130 = vmatpush1.msra.mxu0 0.0
    %131 = vmatprep.subr.mxu0 0.0
    %132 = vmatpush1.msra.mxu0 0.0
    %133 = vmatprep.subr.mxu0 0.0
    %134 = vmatpush1.msra.mxu0 0.0
    %135 = vmatprep.subr.mxu0 0.0
    %136 = vmatpush1.msra.mxu0 0.0
    %137 = vmatprep.subr.mxu0 0.0
    %138 = vmatpush1.msra.mxu0 0.0
    %139 = vmatprep.subr.mxu0 0.0
    %140 = vmatpush1.msra.mxu0 0.0
    %141 = vmatprep.subr.mxu0 0.0
    %142 = vmatpush1.msra.mxu0 0.0
    %143 = vmatprep.subr.mxu0 0.0
    %144 = vmatpush1.msra.mxu0 0.0
    %145 = vmatprep.subr.mxu0 0.0
    %146 = vmatpush1.msra.mxu0 0.0
    %147 = vmatprep.subr.mxu0 0.0
    %148 = vmatpush1.msra.mxu0 0.0
    %149 = vmatprep.subr.mxu0 0.0
    %150 = vmatpush1.msra.mxu0 0.0
    %151 = vmatprep.subr.mxu0 0.0
    %152 = vmatpush1.msra.mxu0 0.0
    %153 = vmatprep.subr.mxu0 0.0
    %154 = vmatpush1.msra.mxu0 0.0
    %155 = vmatprep.subr.mxu0 0.0
    %156 = vmatpush1.msra.mxu0 0.0
    %157 = vmatprep.subr.mxu0 0.0
    %158 = vmatpush1.msra.mxu0 0.0
    %159 = vmatprep.subr.mxu0 0.0
    %160 = vmatpush1.msra.mxu0 0.0
    %161 = vmatprep.subr.mxu0 0.0
    %162 = vmatpush1.msra.mxu0 0.0
    %163 = vmatprep.subr.mxu0 0.0
    %164 = vmatpush1.msra.mxu0 0.0
    %165 = vmatprep.subr.mxu0 0.0
    %166 = vmatpush1.msra.mxu0 0.0
    %167 = vmatprep.subr.mxu0 0.0
    %168 = vmatpush1.msra.mxu0 0.0
    %169 = vmatprep.subr.mxu0 0.0
    %170 = vmatpush1.msra.mxu0 0.0
    %171 = vmatprep.subr.mxu0 0.0
    %172 = vmatpush1.msra.mxu0 0.0
    %173 = vmatprep.subr.mxu0 0.0
    %174 = vmatpush1.msra.mxu0 0.0
    %175 = vmatprep.subr.mxu0 0.0
    %176 = vmatpush1.msra.mxu0 0.0
    %177 = vmatprep.subr.mxu0 0.0
    %178 = vmatpush1.msra.mxu0 0.0
    %179 = vmatprep.subr.mxu0 0.0
    %180 = vmatpush1.msra.mxu0 0.0
    %181 = vmatprep.subr.mxu0 0.0
    %182 = vmatpush1.msra.mxu0 0.0
    %183 = vmatprep.mubr.f32.mxu0 0.0
    %184 = vmatmul.mubr.f32.gmra.mrb[0].mxu0 %v72
    %v185 = vpop.f32.mrb[0].mxu0
    %v186 = vadd.f32 %v68, %v185
    %v187 = vpop.f32.mrb[0].mxu0
    %188 = vmatprep.mubr.f32.mxu0 0.0
    %189 = vmatmul.mubr.f32.gmra.mrb[0].mxu0 %v75
    %v190 = vpop.f32.mrb[0].mxu0
    %v191 = vadd.f32 %v68, %v190
    %v192 = vpop.f32.mrb[0].mxu0
    %193 = vmatprep.mubr.f32.mxu0 0.0
    %194 = vmatmul.mubr.f32.gmra.mrb[0].mxu0 %v78
    %v195 = vpop.f32.mrb[0].mxu0
    %v196 = vadd.f32 %v68, %v195
    %v197 = vpop.f32.mrb[0].mxu0
    %198 = vmatprep.mubr.f32.mxu0 0.0
    %199 = vmatmul.mubr.f32.gmra.mrb[0].mxu0 %v81
    %v200 = vpop.f32.mrb[0].mxu0
    %v201 = vadd.f32 %v68, %v200
    %v202 = vpop.f32.mrb[0].mxu0
    %203 = vmatprep.mubr.f32.mxu0 0.0
    %204 = vmatmul.mubr.f32.gmra.mrb[0].mxu0 %v84
    %v205 = vpop.f32.mrb[0].mxu0
    %v206 = vadd.f32 %v68, %v205
    %v207 = vpop.f32.mrb[0].mxu0
    %208 = vmatprep.mubr.f32.mxu0 0.0
    %209 = vmatmul.mubr.f32.gmra.mrb[0].mxu0 %v87
    %v210 = vpop.f32.mrb[0].mxu0
    %v211 = vadd.f32 %v68, %v210
    %v212 = vpop.f32.mrb[0].mxu0
    %213 = vmatprep.mubr.f32.mxu0 0.0
    %214 = vmatmul.mubr.f32.gmra.mrb[0].mxu0 %v90
    %v215 = vpop.f32.mrb[0].mxu0
    %v216 = vadd.f32 %v68, %v215
    %v217 = vpop.f32.mrb[0].mxu0
    %218 = vmatprep.mubr.f32.mxu0 0.0
    %219 = vmatmul.mubr.f32.gmra.mrb[0].mxu0 %v93
    %v220 = vpop.f32.mrb[0].mxu0
    %v221 = vadd.f32 %v68, %v220
    %v222 = vpop.f32.mrb[0].mxu0
    %223 = vmatprep.mubr.f32.mxu0 0.0
    %224 = vmatmul.mubr.f32.gmra.mrb[0].mxu0 %v96
    %v225 = vpop.f32.mrb[0].mxu0
    %v226 = vadd.f32 %v68, %v225
    %v227 = vpop.f32.mrb[0].mxu0
    %228 = vmatprep.mubr.f32.mxu0 0.0
    %229 = vmatmul.mubr.f32.gmra.mrb[0].mxu0 %v99
    %v230 = vpop.f32.mrb[0].mxu0
    %v231 = vadd.f32 %v68, %v230
    %v232 = vpop.f32.mrb[0].mxu0
    %233 = vmatprep.mubr.f32.mxu0 0.0
    %234 = vmatmul.mubr.f32.gmra.mrb[0].mxu0 %v102
    %v235 = vpop.f32.mrb[0].mxu0
    %v236 = vadd.f32 %v68, %v235
    %v237 = vpop.f32.mrb[0].mxu0
    %238 = vmatprep.mubr.f32.mxu0 0.0
    %239 = vmatmul.mubr.f32.gmra.mrb[0].mxu0 %v105
    %v240 = vpop.f32.mrb[0].mxu0
    %v241 = vadd.f32 %v68, %v240
    %v242 = vpop.f32.mrb[0].mxu0
    %243 = vmatprep.mubr.f32.mxu0 0.0
    %244 = vmatmul.mubr.f32.gmra.mrb[0].mxu0 %v108
    %v245 = vpop.f32.mrb[0].mxu0
    %v246 = vadd.f32 %v68, %v245
    %v247 = vpop.f32.mrb[0].mxu0
    %248 = vmatprep.mubr.f32.mxu0 0.0
    %249 = vmatmul.mubr.f32.gmra.mrb[0].mxu0 %v111
    %v250 = vpop.f32.mrb[0].mxu0
    %v251 = vadd.f32 %v68, %v250
    %v252 = vpop.f32.mrb[0].mxu0
    %253 = vmatprep.mubr.f32.mxu0 0.0
    %254 = vmatmul.mubr.f32.gmra.mrb[0].mxu0 %v114
    %v255 = vpop.f32.mrb[0].mxu0
    %v256 = vadd.f32 %v68, %v255
    %v257 = vpop.f32.mrb[0].mxu0
    %258 = vmatprep.mubr.f32.mxu0 0.0
    %259 = vmatmul.mubr.f32.gmra.mrb[0].mxu0 %v117
    %v260 = vpop.f32.mrb[0].mxu0
    %v261 = vadd.f32 %v68, %v260
    %v262 = vpop.f32.mrb[0].mxu0
    %263 = vdwg.mxu0
    %v264 = vmax.f32 %v186, 0.0
    %v265 = vmax.f32 %v191, 0.0
    %v266 = vmax.f32 %v196, 0.0
    %v267 = vmax.f32 %v201, 0.0
    %v268 = vmax.f32 %v206, 0.0
    %v269 = vmax.f32 %v211, 0.0
    %v270 = vmax.f32 %v216, 0.0
    %v271 = vmax.f32 %v221, 0.0
    %v272 = vmax.f32 %v226, 0.0
    %v273 = vmax.f32 %v231, 0.0
    %v274 = vmax.f32 %v236, 0.0
    %v275 = vmax.f32 %v241, 0.0
    %v276 = vmax.f32 %v246, 0.0
    %v277 = vmax.f32 %v251, 0.0
    %v278 = vmax.f32 %v256, 0.0
    %v279 = vmax.f32 %v261, 0.0
    %v280 = vld [vmem:[%s3] sm:$0xff]
    %v281 = vld [vmem:[%s4] sm:$0x3]
    %v283 = vlaneseq
    %v284 = vshrl.u32 %v283, 7
    %v285 = vsub.s32 0, %v284
    %v286 = vrot.slane %v281, %v285
    %v287 = vlaneseq
    %v288 = vshrl.u32 %v287, 7
    %v289 = vsub.s32 1, %v288
    %v290 = vrot.slane %v281, %v289
    %v294 = vcombine.high %v280, %v280
    %vm295 = vcmask 31744
    %v297 = vsel %vm295, %v264, 0
    %v300 = vsel %vm295, %v265, 0
    %v303 = vsel %vm295, %v266, 0
    %v306 = vsel %vm295, %v267, 0
    %v309 = vsel %vm295, %v268, 0
    %v312 = vsel %vm295, %v269, 0
    %v315 = vsel %vm295, %v270, 0
    %v318 = vsel %vm295, %v271, 0
    %v321 = vsel %vm295, %v272, 0
    %v324 = vsel %vm295, %v273, 0
    %v327 = vsel %vm295, %v274, 0
    %v330 = vsel %vm295, %v275, 0
    %v333 = vsel %vm295, %v276, 0
    %v336 = vsel %vm295, %v277, 0
    %v339 = vsel %vm295, %v278, 0
    %v342 = vsel %vm295, %v279, 0
    %vm344 = vcmask 1043456
    %v345 = vsel %vm344, %v280, 0
    %v347 = vsel %vm344, %v294, 0
    %349 = vmatprep.subr.mxu0 %v347
    %350 = vmatpush1.msra.mxu0 %v345
    %351 = vmatprep.subr.mxu0 0.0
    %352 = vmatpush1.msra.mxu0 0.0
    %353 = vmatprep.subr.mxu0 0.0
    %354 = vmatpush1.msra.mxu0 0.0
    %355 = vmatprep.subr.mxu0 0.0
    %356 = vmatpush1.msra.mxu0 0.0
    %357 = vmatprep.subr.mxu0 0.0
    %358 = vmatpush1.msra.mxu0 0.0
    %359 = vmatprep.subr.mxu0 0.0
    %360 = vmatpush1.msra.mxu0 0.0
    %361 = vmatprep.subr.mxu0 0.0
    %362 = vmatpush1.msra.mxu0 0.0
    %363 = vmatprep.subr.mxu0 0.0
    %364 = vmatpush1.msra.mxu0 0.0
    %365 = vmatprep.subr.mxu0 0.0
    %366 = vmatpush1.msra.mxu0 0.0
    %367 = vmatprep.subr.mxu0 0.0
    %368 = vmatpush1.msra.mxu0 0.0
    %369 = vmatprep.subr.mxu0 0.0
    %370 = vmatpush1.msra.mxu0 0.0
    %371 = vmatprep.subr.mxu0 0.0
    %372 = vmatpush1.msra.mxu0 0.0
    %373 = vmatprep.subr.mxu0 0.0
    %374 = vmatpush1.msra.mxu0 0.0
    %375 = vmatprep.subr.mxu0 0.0
    %376 = vmatpush1.msra.mxu0 0.0
    %377 = vmatprep.subr.mxu0 0.0
    %378 = vmatpush1.msra.mxu0 0.0
    %379 = vmatprep.subr.mxu0 0.0
    %380 = vmatpush1.msra.mxu0 0.0
    %381 = vmatprep.subr.mxu0 0.0
    %382 = vmatpush1.msra.mxu0 0.0
    %383 = vmatprep.subr.mxu0 0.0
    %384 = vmatpush1.msra.mxu0 0.0
    %385 = vmatprep.subr.mxu0 0.0
    %386 = vmatpush1.msra.mxu0 0.0
    %387 = vmatprep.subr.mxu0 0.0
    %388 = vmatpush1.msra.mxu0 0.0
    %389 = vmatprep.subr.mxu0 0.0
    %390 = vmatpush1.msra.mxu0 0.0
    %391 = vmatprep.subr.mxu0 0.0
    %392 = vmatpush1.msra.mxu0 0.0
    %393 = vmatprep.subr.mxu0 0.0
    %394 = vmatpush1.msra.mxu0 0.0
    %395 = vmatprep.subr.mxu0 0.0
    %396 = vmatpush1.msra.mxu0 0.0
    %397 = vmatprep.subr.mxu0 0.0
    %398 = vmatpush1.msra.mxu0 0.0
    %399 = vmatprep.subr.mxu0 0.0
    %400 = vmatpush1.msra.mxu0 0.0
    %401 = vmatprep.subr.mxu0 0.0
    %402 = vmatpush1.msra.mxu0 0.0
    %403 = vmatprep.subr.mxu0 0.0
    %404 = vmatpush1.msra.mxu0 0.0
    %405 = vmatprep.subr.mxu0 0.0
    %406 = vmatpush1.msra.mxu0 0.0
    %407 = vmatprep.subr.mxu0 0.0
    %408 = vmatpush1.msra.mxu0 0.0
    %409 = vmatprep.subr.mxu0 0.0
    %410 = vmatpush1.msra.mxu0 0.0
    %411 = vmatprep.subr.mxu0 0.0
    %412 = vmatpush1.msra.mxu0 0.0
    %413 = vmatprep.mubr.f32.mxu0 0.0
    %414 = vmatmul.mubr.f32.gmra.mrb[0].mxu0 %v297
    %v415 = vpop.f32.mrb[0].mxu0
    %v416 = vadd.f32 %v286, %v415
    %v417 = vpop.f32.mrb[0].mxu0
    %v418 = vadd.f32 %v290, %v417
    %419 = vmatprep.mubr.f32.mxu0 0.0
    %420 = vmatmul.mubr.f32.gmra.mrb[0].mxu0 %v300
    %v421 = vpop.f32.mrb[0].mxu0
    %v422 = vadd.f32 %v286, %v421
    %v423 = vpop.f32.mrb[0].mxu0
    %v424 = vadd.f32 %v290, %v423
    %425 = vmatprep.mubr.f32.mxu0 0.0
    %426 = vmatmul.mubr.f32.gmra.mrb[0].mxu0 %v303
    %v427 = vpop.f32.mrb[0].mxu0
    %v428 = vadd.f32 %v286, %v427
    %v429 = vpop.f32.mrb[0].mxu0
    %v430 = vadd.f32 %v290, %v429
    %431 = vmatprep.mubr.f32.mxu0 0.0
    %432 = vmatmul.mubr.f32.gmra.mrb[0].mxu0 %v306
    %v433 = vpop.f32.mrb[0].mxu0
    %v434 = vadd.f32 %v286, %v433
    %v435 = vpop.f32.mrb[0].mxu0
    %v436 = vadd.f32 %v290, %v435
    %437 = vmatprep.mubr.f32.mxu0 0.0
    %438 = vmatmul.mubr.f32.gmra.mrb[0].mxu0 %v309
    %v439 = vpop.f32.mrb[0].mxu0
    %v440 = vadd.f32 %v286, %v439
    %v441 = vpop.f32.mrb[0].mxu0
    %v442 = vadd.f32 %v290, %v441
    %443 = vmatprep.mubr.f32.mxu0 0.0
    %444 = vmatmul.mubr.f32.gmra.mrb[0].mxu0 %v312
    %v445 = vpop.f32.mrb[0].mxu0
    %v446 = vadd.f32 %v286, %v445
    %v447 = vpop.f32.mrb[0].mxu0
    %v448 = vadd.f32 %v290, %v447
    %449 = vmatprep.mubr.f32.mxu0 0.0
    %450 = vmatmul.mubr.f32.gmra.mrb[0].mxu0 %v315
    %v451 = vpop.f32.mrb[0].mxu0
    %v452 = vadd.f32 %v286, %v451
    %v453 = vpop.f32.mrb[0].mxu0
    %v454 = vadd.f32 %v290, %v453
    %455 = vmatprep.mubr.f32.mxu0 0.0
    %456 = vmatmul.mubr.f32.gmra.mrb[0].mxu0 %v318
    %v457 = vpop.f32.mrb[0].mxu0
    %v458 = vadd.f32 %v286, %v457
    %v459 = vpop.f32.mrb[0].mxu0
    %v460 = vadd.f32 %v290, %v459
    %461 = vmatprep.mubr.f32.mxu0 0.0
    %462 = vmatmul.mubr.f32.gmra.mrb[0].mxu0 %v321
    %v463 = vpop.f32.mrb[0].mxu0
    %v464 = vadd.f32 %v286, %v463
    %v465 = vpop.f32.mrb[0].mxu0
    %v466 = vadd.f32 %v290, %v465
    %467 = vmatprep.mubr.f32.mxu0 0.0
    %468 = vmatmul.mubr.f32.gmra.mrb[0].mxu0 %v324
    %v469 = vpop.f32.mrb[0].mxu0
    %v470 = vadd.f32 %v286, %v469
    %v471 = vpop.f32.mrb[0].mxu0
    %v472 = vadd.f32 %v290, %v471
    %473 = vmatprep.mubr.f32.mxu0 0.0
    %474 = vmatmul.mubr.f32.gmra.mrb[0].mxu0 %v327
    %v475 = vpop.f32.mrb[0].mxu0
    %v476 = vadd.f32 %v286, %v475
    %v477 = vpop.f32.mrb[0].mxu0
    %v478 = vadd.f32 %v290, %v477
    %479 = vmatprep.mubr.f32.mxu0 0.0
    %480 = vmatmul.mubr.f32.gmra.mrb[0].mxu0 %v330
    %v481 = vpop.f32.mrb[0].mxu0
    %v482 = vadd.f32 %v286, %v481
    %v483 = vpop.f32.mrb[0].mxu0
    %v484 = vadd.f32 %v290, %v483
    %485 = vmatprep.mubr.f32.mxu0 0.0
    %486 = vmatmul.mubr.f32.gmra.mrb[0].mxu0 %v333
    %v487 = vpop.f32.mrb[0].mxu0
    %v488 = vadd.f32 %v286, %v487
    %v489 = vpop.f32.mrb[0].mxu0
    %v490 = vadd.f32 %v290, %v489
    %491 = vmatprep.mubr.f32.mxu0 0.0
    %492 = vmatmul.mubr.f32.gmra.mrb[0].mxu0 %v336
    %v493 = vpop.f32.mrb[0].mxu0
    %v494 = vadd.f32 %v286, %v493
    %v495 = vpop.f32.mrb[0].mxu0
    %v496 = vadd.f32 %v290, %v495
    %497 = vmatprep.mubr.f32.mxu0 0.0
    %498 = vmatmul.mubr.f32.gmra.mrb[0].mxu0 %v339
    %v499 = vpop.f32.mrb[0].mxu0
    %v500 = vadd.f32 %v286, %v499
    %v501 = vpop.f32.mrb[0].mxu0
    %v502 = vadd.f32 %v290, %v501
    %503 = vmatprep.mubr.f32.mxu0 0.0
    %504 = vmatmul.mubr.f32.gmra.mrb[0].mxu0 %v342
    %v505 = vpop.f32.mrb[0].mxu0
    %v506 = vadd.f32 %v286, %v505
    %v507 = vpop.f32.mrb[0].mxu0
    %v508 = vadd.f32 %v290, %v507
    %509 = vdwg.mxu0
    %v510 = vmax.f32 %v416, 0.0
    %v511 = vmax.f32 %v418, 0.0
    %v512 = vmax.f32 %v422, 0.0
    %v513 = vmax.f32 %v424, 0.0
    %v514 = vmax.f32 %v428, 0.0
    %v515 = vmax.f32 %v430, 0.0
    %v516 = vmax.f32 %v434, 0.0
    %v517 = vmax.f32 %v436, 0.0
    %v518 = vmax.f32 %v440, 0.0
    %v519 = vmax.f32 %v442, 0.0
    %v520 = vmax.f32 %v446, 0.0
    %v521 = vmax.f32 %v448, 0.0
    %v522 = vmax.f32 %v452, 0.0
    %v523 = vmax.f32 %v454, 0.0
    %v524 = vmax.f32 %v458, 0.0
    %v525 = vmax.f32 %v460, 0.0
    %v526 = vmax.f32 %v464, 0.0
    %v527 = vmax.f32 %v466, 0.0
    %v528 = vmax.f32 %v470, 0.0
    %v529 = vmax.f32 %v472, 0.0
    %v530 = vmax.f32 %v476, 0.0
    %v531 = vmax.f32 %v478, 0.0
    %v532 = vmax.f32 %v482, 0.0
    %v533 = vmax.f32 %v484, 0.0
    %v534 = vmax.f32 %v488, 0.0
    %v535 = vmax.f32 %v490, 0.0
    %v536 = vmax.f32 %v494, 0.0
    %v537 = vmax.f32 %v496, 0.0
    %v538 = vmax.f32 %v500, 0.0
    %v539 = vmax.f32 %v502, 0.0
    %v540 = vmax.f32 %v506, 0.0
    %v541 = vmax.f32 %v508, 0.0
    %542 = vst [vmem:[%s5] sm:$0xff] %v510
    %543 = vst [vmem:[%s5 + $0x8] sm:$0xff] %v511
    %544 = vst [vmem:[%s5 + $0x10] sm:$0xff] %v512
    %545 = vst [vmem:[%s5 + $0x18] sm:$0xff] %v513
    %546 = vst [vmem:[%s5 + $0x20] sm:$0xff] %v514
    %547 = vst [vmem:[%s5 + $0x28] sm:$0xff] %v515
    %548 = vst [vmem:[%s5 + $0x30] sm:$0xff] %v516
    %549 = vst [vmem:[%s5 + $0x38] sm:$0xff] %v517
    %550 = vst [vmem:[%s5 + $0x40] sm:$0xff] %v518
    %551 = vst [vmem:[%s5 + $0x48] sm:$0xff] %v519
    %552 = vst [vmem:[%s5 + $0x50] sm:$0xff] %v520
    %553 = vst [vmem:[%s5 + $0x58] sm:$0xff] %v521
    %554 = vst [vmem:[%s5 + $0x60] sm:$0xff] %v522
    %555 = vst [vmem:[%s5 + $0x68] sm:$0xff] %v523
    %556 = vst [vmem:[%s5 + $0x70] sm:$0xff] %v524
    %557 = vst [vmem:[%s5 + $0x78] sm:$0xff] %v525
    %558 = vst [vmem:[%s5 + $0x80] sm:$0xff] %v526
    %559 = vst [vmem:[%s5 + $0x88] sm:$0xff] %v527
    %560 = vst [vmem:[%s5 + $0x90] sm:$0xff] %v528
    %561 = vst [vmem:[%s5 + $0x98] sm:$0xff] %v529
    %562 = vst [vmem:[%s5 + $0xa0] sm:$0xff] %v530
    %563 = vst [vmem:[%s5 + $0xa8] sm:$0xff] %v531
    %564 = vst [vmem:[%s5 + $0xb0] sm:$0xff] %v532
    %565 = vst [vmem:[%s5 + $0xb8] sm:$0xff] %v533
    %566 = vst [vmem:[%s5 + $0xc0] sm:$0xff] %v534
    %567 = vst [vmem:[%s5 + $0xc8] sm:$0xff] %v535
    %568 = vst [vmem:[%s5 + $0xd0] sm:$0xff] %v536
    %569 = vst [vmem:[%s5 + $0xd8] sm:$0xff] %v537
    %570 = vst [vmem:[%s5 + $0xe0] sm:$0xff] %v538
    %571 = vst [vmem:[%s5 + $0xe8] sm:$0xff] %v539
    %572 = vst [vmem:[%s5 + $0xf0] sm:$0xff] %v540
    %573 = vst [vmem:[%s5 + $0xf8] sm:$0xff] %v541
    // Predicated region
    $region30: #{upsam4_forward.1} parent=1 // pred_check
      _
    $region31: #{upsam4_forward.1} parent=1 // pred_check_branch
      %575 = sbr.rel (0) target = $region33
    $region32: #{upsam4_forward.1} parent=1 // pred_region
      _
    $region33: #{upsam4_forward.1} parent=1 // pred_fallthru
      _
    // Predicated region
    $region34: #{upsam4_forward.1} parent=1 // pred_check
      _
    $region35: #{upsam4_forward.1} parent=1 // pred_check_branch
      %577 = sbr.rel (0) target = $region37
    $region36: #{upsam4_forward.1} parent=1 // pred_region
      _
    $region37: #{upsam4_forward.1} parent=1 // pred_fallthru
      _
    %578 = vsyncpa [#allocation3], 1
    %579 = vsyncpa [#allocation5], 1

</llo_original>
